<compile_context>
chip_gen: v5e
topology: v5e:2x2
jax: 0.10.0
libtpu: 0.0.40
codegen_flags: <defaults>
</compile_context>

<pallas_src>
import functools

import jax
import jax.numpy as jnp
from jax.experimental import pallas as pl
from jax.experimental.pallas import tpu as pltpu


# ----------------------------- sizing helpers ------------------------------

def _round_up(x, m):
    return ((x + m - 1) // m) * m


def _vmem_capacity_bytes():
    """Physical per-core VMEM (128 MiB v5e/v6e, 64 MiB v7x); safe fallback."""
    try:
        info = pltpu.get_tpu_info()
        cap = int(getattr(info, "vmem_capacity_bytes", 0))
        if cap > 0:
            return cap
    except Exception:
        pass
    return 64 * 1024 * 1024  # conservative (v7x per-TC)


def _largest_tile(dim_padded, cap):
    """Largest multiple of 128 that divides dim_padded and is <= cap."""
    best = 128
    c = 128
    top = min(cap, dim_padded)
    while c <= top:
        if dim_padded % c == 0:
            best = c
        c += 128
    return best


def _shrink_tile(tile, dim_padded):
    """Next smaller 128-aligned divisor of dim_padded below `tile` (if any)."""
    c = tile - 128
    while c >= 128:
        if dim_padded % c == 0:
            return c
        c -= 128
    return tile


# --------------------------------- kernels ---------------------------------

def _linear_kernel_acc(x_ref, w_ref, b_ref, o_ref, acc_ref, *, in_cast, out_dtype):
    """K-tiled path: f32 accumulator, init at k==0, bias + out-cast at k==last."""
    k = pl.program_id(2)

    @pl.when(k == 0)
    def _init():
        acc_ref[...] = jnp.zeros_like(acc_ref)

    x = x_ref[...]
    if in_cast is not None and x.dtype != jnp.dtype(in_cast):
        x = x.astype(in_cast)  # CastModule in-cast on the activation tile (VPU)
    acc_ref[...] += jnp.dot(x, w_ref[...], preferred_element_type=jnp.float32)

    @pl.when(k == pl.num_programs(2) - 1)
    def _finalize():
        # bias is pre-cast to f32 at setup time; single out-cast per tile.
        o_ref[...] = (acc_ref[...] + b_ref[...]).astype(out_dtype)


def _linear_kernel_single(x_ref, w_ref, b_ref, o_ref, *, in_cast, out_dtype):
    """Single-K-step path: no scratch, no zero-init, write x@W + b directly."""
    x = x_ref[...]
    if in_cast is not None and x.dtype != jnp.dtype(in_cast):
        x = x.astype(in_cast)
    acc = jnp.dot(x, w_ref[...], preferred_element_type=jnp.float32)
    o_ref[...] = (acc + b_ref[...]).astype(out_dtype)


# ------------------------------ pallas wrapper ------------------------------

def _cast_linear_padded(x, w_pad, b_pad, *, M, K, N, in_cast, out_dtype):
    """Fused (in_cast -> x @ W + b -> out_cast) over 128-padded parameters.

    x:     [M, K]          activations (unpadded; padded here only if needed)
    w_pad: [K_pad, N_pad]  weight, zero-padded to 128 multiples at setup time
    b_pad: [1, N_pad]      bias, f32, zero-padded at setup time
    """
    k_pad, n_pad = w_pad.shape

    cap = _vmem_capacity_bytes()
    vmem_limit = (cap * 3) // 4          # raise scoped VMEM above 16/32 MiB default
    budget = (cap * 11) // 20            # ~55% of physical VMEM for pipeline buffers

    # --- M tiling: avoid the pad/slice round trip whenever possible ---------
    tile_m_cap = 512
    if M <= tile_m_cap:
        tile_m = _round_up(M, 16)        # sublane / bf16-packing aligned
    else:
        tile_m = None
        for c in (512, 256, 128):
            if M % c == 0:               # exact divisor -> no activation padding
                tile_m = c
                break
        if tile_m is None:
            tile_m = tile_m_cap          # ragged large M: pad the last tile only
    m_pad = _round_up(M, tile_m)

    # --- N / K tiling: largest lane-aligned divisors that fit the budget ----
    n_cap = 2048 if cap >= 100 * 1024 * 1024 else 1024   # v5e/v6e vs v7x VMEM
    tile_n = _largest_tile(n_pad, n_cap)
    tile_k = _largest_tile(k_pad, 1024)

    xb = jnp.dtype(x.dtype).itemsize
    wb = jnp.dtype(w_pad.dtype).itemsize
    ob = jnp.dtype(out_dtype).itemsize

    def _footprint(tm, tn, tk):
        # double-buffered x/w/out + f32 accumulator + (tiny) bias buffers
        return (2 * tm * tk * xb + 2 * tk * tn * wb
                + 2 * tm * tn * ob + tm * tn * 4 + 2 * tn * 4)

    for _ in range(64):
        if _footprint(tile_m, tile_n, tile_k) <= budget:
            break
        nk = _shrink_tile(tile_k, k_pad)          # shrink reduction dim first
        if nk != tile_k:
            tile_k = nk
            continue
        nn = _shrink_tile(tile_n, n_pad)          # then output-N
        if nn != tile_n:
            tile_n = nn
            continue
        if tile_m > 16:                           # M last resort
            tile_m = max(16, tile_m // 2)
            m_pad = _round_up(M, tile_m)
            continue
        break

    # v7x has 2 TensorCores sharing the grid via "parallel" axes: make sure the
    # parallel axes expose >= 2 tiles (negligible cost on v5e/v6e).
    if ((m_pad // tile_m) * (n_pad // tile_n) == 1
            and tile_n >= 512 and tile_n % 256 == 0):
        tile_n //= 2

    # Pad activations only when required (ragged M or non-128-aligned H_in).
    if m_pad != M or k_pad != K:
        x = jnp.pad(x, ((0, m_pad - M), (0, k_pad - K)))

    grid = (m_pad // tile_m, n_pad // tile_n, k_pad // tile_k)

    if grid[2] == 1:
        kernel = functools.partial(_linear_kernel_single,
                                   in_cast=in_cast, out_dtype=out_dtype)
        scratch = []
    else:
        kernel = functools.partial(_linear_kernel_acc,
                                   in_cast=in_cast, out_dtype=out_dtype)
        scratch = [pltpu.VMEM((tile_m, tile_n), jnp.float32)]

    out = pl.pallas_call(
        kernel,
        out_shape=jax.ShapeDtypeStruct((m_pad, n_pad), out_dtype),
        grid_spec=pltpu.PrefetchScalarGridSpec(
            num_scalar_prefetch=0,
            grid=grid,
            in_specs=[
                # activation tile marches over (M, K)
                pl.BlockSpec((tile_m, tile_k), lambda i, j, k: (i, k)),
                # weight tile marches over (K, N)
                pl.BlockSpec((tile_k, tile_n), lambda i, j, k: (k, j)),
                # bias tile marches over N only (already f32)
                pl.BlockSpec((1, tile_n), lambda i, j, k: (0, j)),
            ],
            out_specs=pl.BlockSpec((tile_m, tile_n), lambda i, j, k: (i, j)),
            scratch_shapes=scratch,
        ),
        compiler_params=pltpu.CompilerParams(
            dimension_semantics=("parallel", "parallel", "arbitrary"),
            vmem_limit_bytes=int(vmem_limit)),
    )(x, w_pad, b_pad)

    if m_pad != M or n_pad != N:
        out = out[:M, :N]
    return out


# --------------------------- module-level wrapper ---------------------------

def make_cast_module_linear(w, b, *, in_cast=jnp.float32, out_cast=jnp.bfloat16,
                            bf16_matmul=True):
    """CastModule(nn.Linear(H_in, H_out)).forward with one-time parameter setup.

    Setup-time (cached across calls, not repeated per forward):
      * weight/bias zero-padded once to 128-aligned (K_pad, N_pad): aligned MXU
        operands and lane-dense output stores,
      * bias pre-cast to f32,
      * fast path: the bf16 copy of the weight is created once here (stated
        accuracy/throughput tradeoff) instead of per call.

    The fast path is only taken when x arrives in bf16 and in_cast is f32/None
    (the bf16 -> f32 in-cast of x is exact), otherwise the faithful path uses
    the module's own f32 weight (default MXU precision; see header note).
    """
    K, N = w.shape
    assert b.shape == (N,), b.shape
    k_pad = _round_up(K, 128)
    n_pad = _round_up(N, 128)

    w_f32 = w
    if (k_pad, n_pad) != (K, N):
        w_f32 = jnp.pad(w, ((0, k_pad - K), (0, n_pad - N)))
    b_f32 = jnp.pad(b.astype(jnp.float32), (0, n_pad - N)).reshape(1, n_pad)
    w_bf16 = w_f32.astype(jnp.bfloat16) if bf16_matmul else None

    def forward(x):
        *lead, h_in = x.shape
        assert h_in == K, (h_in, K)
        xf = x.reshape(-1, K)
        M = xf.shape[0]

        use_fast = (w_bf16 is not None
                    and xf.dtype == jnp.bfloat16
                    and (in_cast is None
                         or jnp.dtype(in_cast) == jnp.dtype(jnp.float32)))
        if use_fast:
            # bf16 -> f32 in-cast of x is exact: feed x to the MXU in bf16
            # against the cached bf16 weight (f32 accumulation).
            w_op, kernel_in_cast = w_bf16, None
        else:
            # Faithful CastModule path: x cast to in_cast inside the kernel,
            # weight used in its own (f32) dtype at default MXU precision.
            w_op, kernel_in_cast = w_f32, in_cast

        if out_cast is not None:
            out_dtype = jnp.dtype(out_cast)
        else:
            out_dtype = jnp.promote_types(
                kernel_in_cast if kernel_in_cast is not None else xf.dtype,
                w_op.dtype)

        y = _cast_linear_padded(xf, w_op, b_f32, M=M, K=K, N=N,
                                in_cast=kernel_in_cast, out_dtype=out_dtype)
        return y.reshape(*lead, N)

    return forward


# ----------------------------------- demo -----------------------------------

if __name__ == "__main__":
    key = jax.random.PRNGKey(0)
    k_x, k_w, k_b = jax.random.split(key, 3)

    batch, seq, hidden_in, hidden_out = 2, 8, 32, 32

    # Input arrives in bf16 (the typical reason CastModule exists) -> in_cast f32.
    x = jax.random.normal(k_x, (batch, seq, hidden_in), dtype=jnp.float32)
    x = x.astype(jnp.bfloat16)

    # Deterministic synthetic nn.Linear parameters (kept in float32).
    w = (jax.random.normal(k_w, (hidden_in, hidden_out), dtype=jnp.float32)
         * (1.0 / jnp.sqrt(hidden_in)))
    b = jax.random.normal(k_b, (hidden_out,), dtype=jnp.float32) * 0.01

    # --- faithful path: f32 weights on the MXU (CastModule numerics) --------
    fwd_faithful = make_cast_module_linear(w, b, in_cast=jnp.float32,
                                           out_cast=jnp.bfloat16,
                                           bf16_matmul=False)
    out_faithful = jax.block_until_ready(fwd_faithful(x))
    ref = (jnp.dot(x.astype(jnp.float32).reshape(-1, hidden_in), w) + b
           ).astype(jnp.bfloat16).reshape(batch, seq, hidden_out)
    assert out_faithful.shape == (batch, seq, hidden_out)
    assert out_faithful.dtype == jnp.bfloat16
    assert jnp.allclose(out_faithful.astype(jnp.float32),
                        ref.astype(jnp.float32), atol=2e-2, rtol=2e-2)

    # --- fast path: cached bf16 weight copy, bf16 MXU operands --------------
    fwd_fast = make_cast_module_linear(w, b, in_cast=jnp.float32,
                                       out_cast=jnp.bfloat16, bf16_matmul=True)
    out_fast = jax.block_until_ready(fwd_fast(x))
    ref_fast = (jnp.dot(x.astype(jnp.float32).reshape(-1, hidden_in),
                        w.astype(jnp.bfloat16).astype(jnp.float32)) + b
                ).astype(jnp.bfloat16).reshape(batch, seq, hidden_out)
    assert out_fast.shape == (batch, seq, hidden_out)
    assert out_fast.dtype == jnp.bfloat16
    assert jnp.allclose(out_fast.astype(jnp.float32),
                        ref_fast.astype(jnp.float32), atol=2e-2, rtol=2e-2)

    print("KERNEL_OK")
</pallas_src>

<mosaic_0001>
module attributes {stable_mosaic.version = 11 : i64} {
  func.func @_linear_kernel_single(%arg0: i32, %arg1: i32, %arg2: i32, %arg3: memref<16x128xbf16, #tpu.memory_space<vmem>>, %arg4: memref<128x128xf32, #tpu.memory_space<vmem>>, %arg5: memref<1x128xf32, #tpu.memory_space<vmem>>, %arg6: memref<16x128xbf16, #tpu.memory_space<vmem>>) attributes {dimension_semantics = [#tpu.dimension_semantics<parallel>, #tpu.dimension_semantics<parallel>, #tpu.dimension_semantics<arbitrary>], iteration_bounds = array<i64: 1, 1, 1>, scalar_prefetch = 0 : i64, scratch_operands = 0 : i64, tpu.core_type = #tpu.core_type<tc>, window_params = [{transform_indices = @transform_0, window_bounds = array<i64: 16, 128>}, {transform_indices = @transform_1, window_bounds = array<i64: 128, 128>}, {transform_indices = @transform_2, window_bounds = array<i64: 1, 128>}, {transform_indices = @transform_3, window_bounds = array<i64: 16, 128>}]} {
    %c0 = arith.constant 0 : index
    %c0_0 = arith.constant 0 : index
    %0 = vector.load %arg3[%c0, %c0_0] : memref<16x128xbf16, #tpu.memory_space<vmem>>, vector<16x128xbf16>
    %1 = arith.extf %0 : vector<16x128xbf16> to vector<16x128xf32>
    %c0_1 = arith.constant 0 : index
    %c0_2 = arith.constant 0 : index
    %2 = vector.load %arg4[%c0_1, %c0_2] : memref<128x128xf32, #tpu.memory_space<vmem>>, vector<128x128xf32>
    %cst = arith.constant dense<0.000000e+00> : vector<16x128xf32>
    %3 = tpu.matmul %1, %2, %cst {dimension_numbers = #tpu.dot_dimension_numbers<[1], [0], [0], [1], [0, 0, 1, 1], [], []>} : vector<16x128xf32>, vector<128x128xf32>, vector<16x128xf32> -> vector<16x128xf32>
    %c0_3 = arith.constant 0 : index
    %c0_4 = arith.constant 0 : index
    %4 = vector.load %arg5[%c0_3, %c0_4] : memref<1x128xf32, #tpu.memory_space<vmem>>, vector<1x128xf32>
    %5 = vector.broadcast %4 : vector<1x128xf32> to vector<16x128xf32>
    %6 = arith.addf %3, %5 : vector<16x128xf32>
    %7 = arith.truncf %6 : vector<16x128xf32> to vector<16x128xbf16>
    %c0_5 = arith.constant 0 : index
    %c0_6 = arith.constant 0 : index
    %8 = vector.load %arg6[%c0_5, %c0_6] : memref<16x128xbf16, #tpu.memory_space<vmem>>, vector<16x128xbf16>
    tpu.vector_store %arg6[%c0_5, %c0_6], %7 {strides = array<i32>} : memref<16x128xbf16, #tpu.memory_space<vmem>>, vector<16x128xbf16>,
    return
  }
  func.func @transform_0(%arg0: i32, %arg1: i32, %arg2: i32) -> (i32, i32) {
    %c0_i32 = arith.constant 0 : i32
    return %arg0, %arg2 : i32, i32
  }
  func.func @transform_1(%arg0: i32, %arg1: i32, %arg2: i32) -> (i32, i32) {
    %c0_i32 = arith.constant 0 : i32
    return %arg2, %arg1 : i32, i32
  }
  func.func @transform_2(%arg0: i32, %arg1: i32, %arg2: i32) -> (i32, i32) {
    %c0_i32 = arith.constant 0 : i32
    %c0_i32_0 = arith.constant 0 : i32
    return %c0_i32, %arg1 : i32, i32
  }
  func.func @transform_3(%arg0: i32, %arg1: i32, %arg2: i32) -> (i32, i32) {
    %c0_i32 = arith.constant 0 : i32
    return %arg0, %arg1 : i32, i32
  }
}

</mosaic_0001>

<llo_original>
// kernel: tpu_custom_call.1
$region0: #{tpu_custom_call.1}
  #allocation0 [shape = 'u32[]', space=smem, size = 0x4, offset = 0x4, fixed_abs, tag = 'smem constant byte address 0x4 - core index']
  #allocation1 [shape = 'u32[72,128]{1,0:T(1,128)}', space=vmem, size = 0x9000, scoped, tag = 'internal scratch']
  %s0 = inlined_call_operand.hbm [shape: bf16[16,128], index: 0, kind: input, shape index: {}]
  %s1 = inlined_call_operand.hbm [shape: f32[128,128], index: 1, kind: input, shape index: {}]
  %s2 = inlined_call_operand.vmem [shape: f32[1,128], index: 2, kind: input, shape index: {}]
  %s3 = inlined_call_operand.hbm [shape: bf16[16,128], index: 3, kind: output, shape index: {}]
  %s4 = sld [smem:[#allocation0]]
  $region30: #{tpu_custom_call.1} parent=0
    _
  %s6 = ssub.s32 1, %s4
  %s7 = scalar_select 0, %s6, %s4
  $region1: #{tpu_custom_call.1} parent=0
    #allocation2 [shape = 'u8[4096]{0}', space=vmem, size = 0x1000, scoped, tag = 'input window, operand 0, single buffered']
    #allocation3 [shape = 's32[1]{0}', space=sflag, size = 0x4, scoped, tag = 'scoped memory for tpu_custom_call.1']
    #allocation4 [shape = 's32[1]{0}', space=sflag, size = 0x4, scoped, tag = 'scoped memory for tpu_custom_call.1']
    #allocation5 [shape = 'u8[65536]{0}', space=vmem, size = 0x10000, scoped, tag = 'input window, operand 1, single buffered']
    #allocation6 [shape = 's32[1]{0}', space=sflag, size = 0x4, scoped, tag = 'scoped memory for tpu_custom_call.1']
    #allocation7 [shape = 'u8[4096]{0}', space=vmem, size = 0x1000, scoped, tag = 'output window, operand 0, single buffered']
    %8 = vsyncpa [#allocation3], 0
    %9 = vsyncpa [#allocation6], 0
    %10 = vsyncpa [#allocation4], 0
    // Predicated region
    $region2: #{tpu_custom_call.1} parent=1 // pred_check
      _
    $region3: #{tpu_custom_call.1} parent=1 // pred_check_branch
      %12 = sbr.rel (0) target = $region5
    $region4: #{tpu_custom_call.1} parent=1 // pred_region
      %14 = vsyncadd [#allocation3], 0
      %s15 = sshll.u32 %s0, 4
      %s16 = int_to_ptr.hbm [resolvable:$true] %s15
      %s17 = sshll.u32 [#allocation2], 4
      %s18 = int_to_ptr.vmem [resolvable:$true] %s17
      %23 = dma.hbm_to_vmem [thread:$0]  %s16, 128, %s18, [#allocation3], 64, 64, 4
    $region5: #{tpu_custom_call.1} parent=1 // pred_fallthru
      _
    // Predicated region
    $region6: #{tpu_custom_call.1} parent=1 // pred_check
      _
    $region7: #{tpu_custom_call.1} parent=1 // pred_check_branch
      %25 = sbr.rel (0) target = $region9
    $region8: #{tpu_custom_call.1} parent=1 // pred_region
      %27 = vsyncadd [#allocation6], 0
      %s28 = sshll.u32 %s1, 4
      %s29 = int_to_ptr.hbm [resolvable:$true] %s28
      %s30 = sshll.u32 [#allocation5], 4
      %s31 = int_to_ptr.vmem [resolvable:$true] %s30
      %36 = dma.hbm_to_vmem [thread:$0]  %s29, 2048, %s31, [#allocation6], 128, 128, 8
    $region9: #{tpu_custom_call.1} parent=1 // pred_fallthru
      _
    // Predicated region
    $region10: #{tpu_custom_call.1} parent=1 // pred_check
      _
    $region11: #{tpu_custom_call.1} parent=1 // pred_check_branch
      %38 = sbr.rel (0) target = $region13
    $region12: #{tpu_custom_call.1} parent=1 // pred_region
      _
    $region13: #{tpu_custom_call.1} parent=1 // pred_fallthru
      _
    // Predicated region
    $region14: #{tpu_custom_call.1} parent=1 // pred_check
      _
    $region15: #{tpu_custom_call.1} parent=1 // pred_check_branch
      %40 = sbr.rel (0) target = $region17
    $region16: #{tpu_custom_call.1} parent=1 // pred_region
      %42 = dma.done [#allocation3], 128
    $region17: #{tpu_custom_call.1} parent=1 // pred_fallthru
      _
    // Predicated region
    $region18: #{tpu_custom_call.1} parent=1 // pred_check
      _
    $region19: #{tpu_custom_call.1} parent=1 // pred_check_branch
      %44 = sbr.rel (0) target = $region21
    $region20: #{tpu_custom_call.1} parent=1 // pred_region
      %46 = dma.done [#allocation6], 2048
    $region21: #{tpu_custom_call.1} parent=1 // pred_fallthru
      _
    %v47 = vld [vmem:[#allocation2] sm:$0xf]
    %v48 = vld [vmem:[#allocation2 + $0x4] sm:$0xf]
    %v49 = vunpack.c.l.bf16 %v47
    %v50 = vunpack.c.l.bf16 %v48
    %v51 = vld [vmem:[#allocation5] sm:$0xff]
    %v52 = vld [vmem:[#allocation5 + $0x8] sm:$0xff]
    %v53 = vld [vmem:[#allocation5 + $0x10] sm:$0xff]
    %v54 = vld [vmem:[#allocation5 + $0x18] sm:$0xff]
    %v55 = vld [vmem:[#allocation5 + $0x20] sm:$0xff]
    %v56 = vld [vmem:[#allocation5 + $0x28] sm:$0xff]
    %v57 = vld [vmem:[#allocation5 + $0x30] sm:$0xff]
    %v58 = vld [vmem:[#allocation5 + $0x38] sm:$0xff]
    %v59 = vld [vmem:[#allocation5 + $0x40] sm:$0xff]
    %v60 = vld [vmem:[#allocation5 + $0x48] sm:$0xff]
    %v61 = vld [vmem:[#allocation5 + $0x50] sm:$0xff]
    %v62 = vld [vmem:[#allocation5 + $0x58] sm:$0xff]
    %v63 = vld [vmem:[#allocation5 + $0x60] sm:$0xff]
    %v64 = vld [vmem:[#allocation5 + $0x68] sm:$0xff]
    %v65 = vld [vmem:[#allocation5 + $0x70] sm:$0xff]
    %v66 = vld [vmem:[#allocation5 + $0x78] sm:$0xff]
    %v67 = vld [vmem:[%s2] sm:$0x1]
    %v69 = vperm.slane %v67, 0
    %71 = vmatpush.msra.mxu0 %v66
    %72 = vmatpush.msra.mxu0 %v65
    %73 = vmatpush.msra.mxu0 %v64
    %74 = vmatpush.msra.mxu0 %v63
    %75 = vmatpush.msra.mxu0 %v62
    %76 = vmatpush.msra.mxu0 %v61
    %77 = vmatpush.msra.mxu0 %v60
    %78 = vmatpush.msra.mxu0 %v59
    %79 = vmatpush.msra.mxu0 %v58
    %80 = vmatpush.msra.mxu0 %v57
    %81 = vmatpush.msra.mxu0 %v56
    %82 = vmatpush.msra.mxu0 %v55
    %83 = vmatpush.msra.mxu0 %v54
    %84 = vmatpush.msra.mxu0 %v53
    %85 = vmatpush.msra.mxu0 %v52
    %86 = vmatpush.msra.mxu0 %v51
    %87 = vmatmul.f32.gmra.mxu0 %v49
    %v88 = vpop.f32.mrf.mxu0
    %v89 = vadd.f32 %v69, %v88
    %90 = vmatmul.f32.gmra.mxu0 %v50
    %v91 = vpop.f32.mrf.mxu0
    %v92 = vadd.f32 %v69, %v91
    %93 = vdwg.mxu0
    %v94 = vpack.c.bf16 %v89, %v89
    %v95 = vpack.c.bf16 %v92, %v92
    %96 = vst [vmem:[#allocation7] sm:$0xf] %v94
    %97 = vst [vmem:[#allocation7 + $0x4] sm:$0xf] %v95
    // Predicated region
    $region22: #{tpu_custom_call.1} parent=1 // pred_check
      _
    $region23: #{tpu_custom_call.1} parent=1 // pred_check_branch
      %99 = sbr.rel (0) target = $region25
    $region24: #{tpu_custom_call.1} parent=1 // pred_region
      %101 = vsyncadd [#allocation4], 0
      %s102 = sshll.u32 [#allocation7], 4
      %s103 = int_to_ptr.vmem [resolvable:$true] %s102
      %s104 = sshll.u32 %s3, 4
      %s105 = int_to_ptr.hbm [resolvable:$true] %s104
      %110 = dma.vmem_to_hbm [thread:$0]  %s103, 128, %s105, [#allocation4], 64, 64, 4
    $region25: #{tpu_custom_call.1} parent=1 // pred_fallthru
      _
    // Predicated region
    $region26: #{tpu_custom_call.1} parent=1 // pred_check
      _
    $region27: #{tpu_custom_call.1} parent=1 // pred_check_branch
      %112 = sbr.rel (0) target = $region29
    $region28: #{tpu_custom_call.1} parent=1 // pred_region
      %114 = dma.done [#allocation4], 128
    $region29: #{tpu_custom_call.1} parent=1 // pred_fallthru
      _
    %115 = vsyncpa [#allocation3], 1
    %116 = vsyncpa [#allocation6], 1
    %117 = vsyncpa [#allocation4], 1

</llo_original>
